<compile_context>
chip_gen: v5e
topology: v5e:2x2
jax: 0.10.0
libtpu: 0.0.40
codegen_flags: <defaults>
</compile_context>

<pallas_src>
import jax
import jax.numpy as jnp
from jax.experimental import pallas as pl
from jax.experimental.pallas import tpu as pltpu

IN_FEATURES = 4
HIDDEN = 128
N_ACTIONS = 2
N_VALUES = 1

LANES = 128          # lane width of a vreg
HEAD_ROWS = 8        # fused head output rows (0,1 = action scores, 2 = value, 3..7 = 0)
SMALL_COLS = 8       # columns of the packed per-hidden-unit parameter slab

# Column layout of the packed (HIDDEN, SMALL_COLS) small-parameter slab `wp`:
#   cols 0..3 : W1^T  (weights input-feature k -> hidden unit j at wp[j, k])
#   col  4    : b1
#   col  5    : fused head bias in rows 0..7 (rows 0,1 = action bias, row 2 = value bias)
#   cols 6..7 : zero
_B1_COL = IN_FEATURES
_BH_COL = IN_FEATURES + 1

# ~10 MiB live VMEM at this tile (dominated by the (128, TB) hidden activation);
# comfortably inside the 32 MiB scoped limit we request below on every generation.
MAX_BATCH_TILE = 8192


def _round_up(n, m):
    return ((n + m - 1) // m) * m


def _choose_batch_tile(B):
    """Pick the batch tile (lane extent) for the grid."""
    if B <= 2 * LANES:
        # Single block; block dim == full array dim is always a legal block shape.
        return B
    # At least 2 lane-granular blocks so v7x's two TensorCores both get work,
    # capped so per-step VMEM stays well inside the scoped limit.
    return min(MAX_BATCH_TILE, _round_up(pl.cdiv(B, 2), LANES))


def policy_kernel(xt_ref, wp_ref, wh_ref, out_ref):
    xt = xt_ref[...]                                   # (4, TB)   feature-major input
    wp = wp_ref[...]                                   # (128, 8)  packed small params

    # ---- Hidden layer (transposed): h^T = relu(W1^T @ x^T + b1) as 4 VPU
    # broadcast-FMAs.  A K=4 MXU pass would fill <2% of the MXU; keep the MXU
    # for the dense K=128 head matmul.  x^T rows are already lane-dense.
    hT = wp[:, _B1_COL:_B1_COL + 1]                    # b1 column (128, 1)
    for k in range(IN_FEATURES):                       # static unroll
        hT = hT + wp[:, k:k + 1] * xt[k:k + 1, :]
    hT = jnp.maximum(hT, 0.0)                          # (128, TB)

    # ---- Fused action + value heads: raw^T = Wh (8,128) @ h^T (128,TB) + bh.
    raw = jnp.dot(wh_ref[...], hT, preferred_element_type=jnp.float32)
    raw = raw + wp[0:HEAD_ROWS, _BH_COL:_BH_COL + 1]   # (8, TB); rows 0,1,2 live, 3..7 == 0

    s0 = raw[0:1, :]                                   # (1, TB)
    s1 = raw[1:2, :]

    # ---- Exact 2-class softmax in stable sigmoid form:
    #   p0 = sigmoid(s0 - s1), p1 = 1 - p0.  No cross-lane reduce.
    d = s0 - s1
    e = jnp.exp(-jnp.abs(d))
    inv = 1.0 / (1.0 + e)
    p0 = jnp.where(d >= 0.0, inv, e * inv)
    p1 = 1.0 - p0

    # ---- Output slab: row 0 = p0, row 1 = p1, rows 2..7 come straight from raw
    # (row 2 already holds the value; rows 3..7 are exactly zero).
    row = jax.lax.broadcasted_iota(jnp.int32, raw.shape, 0)
    out = jnp.where(row == 0, p0, jnp.where(row == 1, p1, raw))
    out_ref[...] = out.astype(out_ref.dtype)


@jax.jit
def policy_forward(x, packed_params):
    """x: (B, 4) float32. Returns (action_probs (B, 2), state_values (B, 1))."""
    wp, wh = packed_params
    x = x.astype(jnp.float32)
    B = x.shape[0]
    xt = x.T                                           # (4, B): batch on the lane axis (16 B/row)

    tb = _choose_batch_tile(B)
    grid = (pl.cdiv(B, tb),)

    out_t = pl.pallas_call(
        policy_kernel,
        out_shape=jax.ShapeDtypeStruct((HEAD_ROWS, B), jnp.float32),
        grid=grid,
        in_specs=[
            pl.BlockSpec((IN_FEATURES, tb), lambda i: (0, i)),
            pl.BlockSpec((HIDDEN, SMALL_COLS), lambda i: (0, 0)),   # resident
            pl.BlockSpec((HEAD_ROWS, HIDDEN), lambda i: (0, 0)),    # resident
        ],
        out_specs=pl.BlockSpec((HEAD_ROWS, tb), lambda i: (0, i)),
        compiler_params=pltpu.CompilerParams(
            dimension_semantics=("parallel",),          # shards batch over v7x's 2 TCs
            vmem_limit_bytes=32 * 1024 * 1024,          # lifts v5e's 16 MiB scoped default
        ),
    )(xt, wp, wh)

    probs = out_t[:N_ACTIONS, :].T                                   # (B, 2)
    values = out_t[N_ACTIONS:N_ACTIONS + N_VALUES, :].T              # (B, 1)
    return probs, values


def policy_value_only(x, packed_params):
    """Equivalent of forward(x, only_value=True) (inference: no_grad is a no-op)."""
    return policy_forward(x, packed_params)[1]


def init_params(key):
    """Deterministic init mimicking nn.Linear's U(-1/sqrt(fan_in), 1/sqrt(fan_in)).

    Weights stored as (in_features, out_features); biases as (1, out)."""
    k1, k2, k3, k4, k5, k6 = jax.random.split(key, 6)

    def unif(k, shape, fan_in):
        bound = 1.0 / jnp.sqrt(jnp.float32(fan_in))
        return jax.random.uniform(k, shape, jnp.float32, -bound, bound)

    w1 = unif(k1, (IN_FEATURES, HIDDEN), IN_FEATURES)
    b1 = unif(k2, (1, HIDDEN), IN_FEATURES)
    wa = unif(k3, (HIDDEN, N_ACTIONS), HIDDEN)
    ba = unif(k4, (1, N_ACTIONS), HIDDEN)
    wv = unif(k5, (HIDDEN, N_VALUES), HIDDEN)
    bv = unif(k6, (1, N_VALUES), HIDDEN)
    return (w1, b1, wa, ba, wv, bv)


def pack_params(raw_params):
    """Pack raw params into the kernel layout: (128, 8) small slab + (8, 128) fused head."""
    w1, b1, wa, ba, wv, bv = raw_params

    wp = jnp.zeros((HIDDEN, SMALL_COLS), jnp.float32)
    wp = wp.at[:, :IN_FEATURES].set(w1.T)                            # W1^T
    wp = wp.at[:, _B1_COL].set(b1.reshape(-1))                       # b1
    wp = wp.at[:N_ACTIONS, _BH_COL].set(ba.reshape(-1))              # action bias -> rows 0,1
    wp = wp.at[N_ACTIONS:N_ACTIONS + N_VALUES, _BH_COL].set(bv.reshape(-1))  # value bias -> row 2

    wh = jnp.zeros((HEAD_ROWS, HIDDEN), jnp.float32)
    wh = wh.at[:N_ACTIONS, :].set(wa.T)                              # rows 0,1 = action head
    wh = wh.at[N_ACTIONS:N_ACTIONS + N_VALUES, :].set(wv.T)          # row 2   = value head
    return (wp, wh)


def policy_forward_ref(x, raw_params):
    """Plain-JAX reference matching the PyTorch forward."""
    w1, b1, wa, ba, wv, bv = raw_params
    h = jnp.maximum(x @ w1 + b1, 0.0)
    probs = jax.nn.softmax(h @ wa + ba, axis=-1)
    values = h @ wv + bv
    return probs, values


# TODO(synk): saved_actions / rewards buffers and Categorical sampling are host-side
# training state, not part of the forward computation, so they are not kernelized.

if __name__ == "__main__":
    key = jax.random.PRNGKey(0)
    pkey, xkey = jax.random.split(key)

    raw_params = init_params(pkey)
    packed_params = pack_params(raw_params)

    # Batch of 8 CartPole-style states, each of dim 4.
    x = jax.random.normal(xkey, (8, IN_FEATURES), dtype=jnp.float32)

    probs, values = policy_forward(x, packed_params)
    probs = jax.block_until_ready(probs)
    values = jax.block_until_ready(values)

    # Correctness check against the plain-JAX reference.
    probs_ref, values_ref = policy_forward_ref(x, raw_params)
    assert probs.shape == (8, N_ACTIONS) and values.shape == (8, N_VALUES)
    assert jnp.allclose(probs, probs_ref, atol=1e-5, rtol=1e-5)
    assert jnp.allclose(values, values_ref, atol=1e-5, rtol=1e-5)
    assert jnp.allclose(jnp.sum(probs, axis=-1), 1.0, atol=1e-5)

    # only_value path.
    v_only = jax.block_until_ready(policy_value_only(x, packed_params))
    assert jnp.allclose(v_only, values_ref, atol=1e-5, rtol=1e-5)

    print("KERNEL_OK")
</pallas_src>

<mosaic_0001>
module attributes {stable_mosaic.version = 11 : i64} {
  func.func @policy_kernel(%arg0: i32, %arg1: memref<4x8xf32, #tpu.memory_space<vmem>>, %arg2: memref<128x8xf32, #tpu.memory_space<vmem>>, %arg3: memref<8x128xf32, #tpu.memory_space<vmem>>, %arg4: memref<8x8xf32, #tpu.memory_space<vmem>>) attributes {dimension_semantics = [#tpu.dimension_semantics<parallel>], iteration_bounds = array<i64: 1>, scalar_prefetch = 0 : i64, scratch_operands = 0 : i64, tpu.core_type = #tpu.core_type<tc>, window_params = [{transform_indices = @transform_0, window_bounds = array<i64: 4, 8>}, {pipeline_mode = #tpu.pipeline_mode<synchronous>, transform_indices = @transform_1, window_bounds = array<i64: 128, 8>}, {pipeline_mode = #tpu.pipeline_mode<synchronous>, transform_indices = @transform_2, window_bounds = array<i64: 8, 128>}, {transform_indices = @transform_3, window_bounds = array<i64: 8, 8>}]} {
    %c0 = arith.constant 0 : index
    %c0_0 = arith.constant 0 : index
    %0 = vector.load %arg1[%c0, %c0_0] : memref<4x8xf32, #tpu.memory_space<vmem>>, vector<4x8xf32>
    %c0_1 = arith.constant 0 : index
    %c0_2 = arith.constant 0 : index
    %1 = vector.load %arg2[%c0_1, %c0_2] : memref<128x8xf32, #tpu.memory_space<vmem>>, vector<128x8xf32>
    %2 = vector.extract_strided_slice %1 {offsets = [0, 4], sizes = [128, 1], strides = [1, 1]} : vector<128x8xf32> to vector<128x1xf32>
    %3 = vector.extract_strided_slice %1 {offsets = [0, 0], sizes = [128, 1], strides = [1, 1]} : vector<128x8xf32> to vector<128x1xf32>
    %4 = vector.extract_strided_slice %0 {offsets = [0, 0], sizes = [1, 8], strides = [1, 1]} : vector<4x8xf32> to vector<1x8xf32>
    %5 = vector.broadcast %3 : vector<128x1xf32> to vector<128x8xf32>
    %6 = vector.broadcast %4 : vector<1x8xf32> to vector<128x8xf32>
    %7 = arith.mulf %5, %6 : vector<128x8xf32>
    %8 = vector.broadcast %2 : vector<128x1xf32> to vector<128x8xf32>
    %9 = arith.addf %8, %7 : vector<128x8xf32>
    %10 = vector.extract_strided_slice %1 {offsets = [0, 1], sizes = [128, 1], strides = [1, 1]} : vector<128x8xf32> to vector<128x1xf32>
    %11 = vector.extract_strided_slice %0 {offsets = [1, 0], sizes = [1, 8], strides = [1, 1]} : vector<4x8xf32> to vector<1x8xf32>
    %12 = vector.broadcast %10 : vector<128x1xf32> to vector<128x8xf32>
    %13 = vector.broadcast %11 : vector<1x8xf32> to vector<128x8xf32>
    %14 = arith.mulf %12, %13 : vector<128x8xf32>
    %15 = arith.addf %9, %14 : vector<128x8xf32>
    %16 = vector.extract_strided_slice %1 {offsets = [0, 2], sizes = [128, 1], strides = [1, 1]} : vector<128x8xf32> to vector<128x1xf32>
    %17 = vector.extract_strided_slice %0 {offsets = [2, 0], sizes = [1, 8], strides = [1, 1]} : vector<4x8xf32> to vector<1x8xf32>
    %18 = vector.broadcast %16 : vector<128x1xf32> to vector<128x8xf32>
    %19 = vector.broadcast %17 : vector<1x8xf32> to vector<128x8xf32>
    %20 = arith.mulf %18, %19 : vector<128x8xf32>
    %21 = arith.addf %15, %20 : vector<128x8xf32>
    %22 = vector.extract_strided_slice %1 {offsets = [0, 3], sizes = [128, 1], strides = [1, 1]} : vector<128x8xf32> to vector<128x1xf32>
    %23 = vector.extract_strided_slice %0 {offsets = [3, 0], sizes = [1, 8], strides = [1, 1]} : vector<4x8xf32> to vector<1x8xf32>
    %24 = vector.broadcast %22 : vector<128x1xf32> to vector<128x8xf32>
    %25 = vector.broadcast %23 : vector<1x8xf32> to vector<128x8xf32>
    %26 = arith.mulf %24, %25 : vector<128x8xf32>
    %27 = arith.addf %21, %26 : vector<128x8xf32>
    %cst = arith.constant 0.000000e+00 : f32
    %28 = vector.broadcast %cst : f32 to vector<128x8xf32>
    %29 = arith.maximumf %27, %28 : vector<128x8xf32>
    %c0_3 = arith.constant 0 : index
    %c0_4 = arith.constant 0 : index
    %30 = vector.load %arg3[%c0_3, %c0_4] : memref<8x128xf32, #tpu.memory_space<vmem>>, vector<8x128xf32>
    %cst_5 = arith.constant dense<0.000000e+00> : vector<8x8xf32>
    %31 = tpu.matmul %30, %29, %cst_5 {dimension_numbers = #tpu.dot_dimension_numbers<[1], [0], [0], [1], [0, 0, 1, 1], [], []>} : vector<8x128xf32>, vector<128x8xf32>, vector<8x8xf32> -> vector<8x8xf32>
    %32 = vector.extract_strided_slice %1 {offsets = [0, 5], sizes = [8, 1], strides = [1, 1]} : vector<128x8xf32> to vector<8x1xf32>
    %33 = vector.broadcast %32 : vector<8x1xf32> to vector<8x8xf32>
    %34 = arith.addf %31, %33 : vector<8x8xf32>
    %35 = vector.extract_strided_slice %34 {offsets = [0, 0], sizes = [1, 8], strides = [1, 1]} : vector<8x8xf32> to vector<1x8xf32>
    %36 = vector.extract_strided_slice %34 {offsets = [1, 0], sizes = [1, 8], strides = [1, 1]} : vector<8x8xf32> to vector<1x8xf32>
    %37 = arith.subf %35, %36 : vector<1x8xf32>
    %38 = math.absf %37 : vector<1x8xf32>
    %cst_6 = arith.constant 0.000000e+00 : f32
    %39 = vector.broadcast %cst_6 : f32 to vector<1x8xf32>
    %40 = arith.subf %39, %38 : vector<1x8xf32>
    %41 = math.exp %40 : vector<1x8xf32>
    %cst_7 = arith.constant 1.000000e+00 : f32
    %42 = vector.broadcast %cst_7 : f32 to vector<1x8xf32>
    %43 = arith.addf %42, %41 : vector<1x8xf32>
    %cst_8 = arith.constant 1.000000e+00 : f32
    %44 = vector.broadcast %cst_8 : f32 to vector<1x8xf32>
    %45 = arith.divf %44, %43 : vector<1x8xf32>
    %cst_9 = arith.constant 0.000000e+00 : f32
    %46 = vector.broadcast %cst_9 : f32 to vector<1x8xf32>
    %47 = arith.cmpf oge, %37, %46 : vector<1x8xf32>
    %48 = arith.mulf %41, %45 : vector<1x8xf32>
    %49 = arith.select %47, %45, %48 : vector<1x8xi1>, vector<1x8xf32>
    %cst_10 = arith.constant 1.000000e+00 : f32
    %50 = vector.broadcast %cst_10 : f32 to vector<1x8xf32>
    %51 = arith.subf %50, %49 : vector<1x8xf32>
    %52 = tpu.iota {dimensions = array<i32: 0>} : vector<8x8xi32>
    %c0_i32 = arith.constant 0 : i32
    %53 = vector.broadcast %c0_i32 : i32 to vector<8x8xi32>
    %54 = arith.cmpi eq, %52, %53 : vector<8x8xi32>
    %c1_i32 = arith.constant 1 : i32
    %55 = vector.broadcast %c1_i32 : i32 to vector<8x8xi32>
    %56 = arith.cmpi eq, %52, %55 : vector<8x8xi32>
    %57 = vector.shape_cast %51 : vector<1x8xf32> to vector<1x8xf32>
    %58 = vector.broadcast %57 : vector<1x8xf32> to vector<8x8xf32>
    %59 = arith.select %56, %58, %34 : vector<8x8xi1>, vector<8x8xf32>
    %60 = vector.shape_cast %49 : vector<1x8xf32> to vector<1x8xf32>
    %61 = vector.broadcast %60 : vector<1x8xf32> to vector<8x8xf32>
    %62 = arith.select %54, %61, %59 : vector<8x8xi1>, vector<8x8xf32>
    %c0_11 = arith.constant 0 : index
    %c0_12 = arith.constant 0 : index
    %63 = vector.load %arg4[%c0_11, %c0_12] : memref<8x8xf32, #tpu.memory_space<vmem>>, vector<8x8xf32>
    tpu.vector_store %arg4[%c0_11, %c0_12], %62 {strides = array<i32>} : memref<8x8xf32, #tpu.memory_space<vmem>>, vector<8x8xf32>,
    return
  }
  func.func @transform_0(%arg0: i32) -> (i32, i32) {
    %c0_i32 = arith.constant 0 : i32
    %c0_i32_0 = arith.constant 0 : i32
    return %c0_i32, %arg0 : i32, i32
  }
  func.func @transform_1(%arg0: i32) -> (i32, i32) {
    %c0_i32 = arith.constant 0 : i32
    %c0_i32_0 = arith.constant 0 : i32
    %c0_i32_1 = arith.constant 0 : i32
    return %c0_i32, %c0_i32_0 : i32, i32
  }
  func.func @transform_2(%arg0: i32) -> (i32, i32) {
    %c0_i32 = arith.constant 0 : i32
    %c0_i32_0 = arith.constant 0 : i32
    %c0_i32_1 = arith.constant 0 : i32
    return %c0_i32, %c0_i32_0 : i32, i32
  }
  func.func @transform_3(%arg0: i32) -> (i32, i32) {
    %c0_i32 = arith.constant 0 : i32
    %c0_i32_0 = arith.constant 0 : i32
    return %c0_i32, %arg0 : i32, i32
  }
}

</mosaic_0001>

<llo_original>
// kernel: policy_forward.1
$region0: #{policy_forward.1}
  #allocation0 [shape = 'u32[]', space=smem, size = 0x4, offset = 0x4, fixed_abs, tag = 'smem constant byte address 0x4 - core index']
  #allocation1 [shape = 'u32[72,128]{1,0:T(1,128)}', space=vmem, size = 0x9000, scoped, tag = 'internal scratch']
  %s0 = inlined_call_operand.vmem [shape: f32[4,8], index: 0, kind: input, shape index: {}]
  %s1 = inlined_call_operand.vmem [shape: f32[128,8], index: 1, kind: input, shape index: {}]
  %s2 = inlined_call_operand.vmem [shape: f32[8,128], index: 2, kind: input, shape index: {}]
  %s3 = inlined_call_operand.vmem [shape: f32[8,8], index: 3, kind: output, shape index: {}]
  %s4 = sld [smem:[#allocation0]]
  $region22: #{policy_forward.1} parent=0
    _
  %s6 = ssub.s32 1, %s4
  %s7 = scalar_select 0, %s6, %s4
  // Predicated region
  $region2: #{policy_forward.1} parent=0 // pred_check
    _
  $region3: #{policy_forward.1} parent=0 // pred_check_branch
    %9 = sbr.rel (0) target = $region5
  $region4: #{policy_forward.1} parent=0 // pred_region
    _
  $region5: #{policy_forward.1} parent=0 // pred_fallthru
    _
  // Predicated region
  $region6: #{policy_forward.1} parent=0 // pred_check
    _
  $region7: #{policy_forward.1} parent=0 // pred_check_branch
    %11 = sbr.rel (0) target = $region9
  $region8: #{policy_forward.1} parent=0 // pred_region
    _
  $region9: #{policy_forward.1} parent=0 // pred_fallthru
    _
  // Predicated region
  $region10: #{policy_forward.1} parent=0 // pred_check
    _
  $region11: #{policy_forward.1} parent=0 // pred_check_branch
    %13 = sbr.rel (0) target = $region13
  $region12: #{policy_forward.1} parent=0 // pred_region
    _
  $region13: #{policy_forward.1} parent=0 // pred_fallthru
    _
  %v14 = vld [vmem:[%s0] sm:$0xf]
  %v15 = vld [vmem:[%s1] sm:$0xff]
  %v16 = vld [vmem:[%s1 + $0x8] sm:$0xff]
  %v17 = vld [vmem:[%s1 + $0x10] sm:$0xff]
  %v18 = vld [vmem:[%s1 + $0x18] sm:$0xff]
  %v19 = vld [vmem:[%s1 + $0x20] sm:$0xff]
  %v20 = vld [vmem:[%s1 + $0x28] sm:$0xff]
  %v21 = vld [vmem:[%s1 + $0x30] sm:$0xff]
  %v22 = vld [vmem:[%s1 + $0x38] sm:$0xff]
  %v23 = vld [vmem:[%s1 + $0x40] sm:$0xff]
  %v24 = vld [vmem:[%s1 + $0x48] sm:$0xff]
  %v25 = vld [vmem:[%s1 + $0x50] sm:$0xff]
  %v26 = vld [vmem:[%s1 + $0x58] sm:$0xff]
  %v27 = vld [vmem:[%s1 + $0x60] sm:$0xff]
  %v28 = vld [vmem:[%s1 + $0x68] sm:$0xff]
  %v29 = vld [vmem:[%s1 + $0x70] sm:$0xff]
  %v30 = vld [vmem:[%s1 + $0x78] sm:$0xff]
  %32 = vset.pattern.permute.xlu0 0
  %33 = vperm.xlu0 %32, %v15
  %v34 = vpop.permute.xlu0 %33
  %37 = vset.pattern.permute.xlu0 0
  %38 = vperm.xlu0 %37, %v16
  %v39 = vpop.permute.xlu0 %38
  %42 = vset.pattern.permute.xlu0 0
  %43 = vperm.xlu0 %42, %v17
  %v44 = vpop.permute.xlu0 %43
  %47 = vset.pattern.permute.xlu0 0
  %48 = vperm.xlu0 %47, %v18
  %v49 = vpop.permute.xlu0 %48
  %52 = vset.pattern.permute.xlu0 0
  %53 = vperm.xlu0 %52, %v19
  %v54 = vpop.permute.xlu0 %53
  %57 = vset.pattern.permute.xlu0 0
  %58 = vperm.xlu0 %57, %v20
  %v59 = vpop.permute.xlu0 %58
  %62 = vset.pattern.permute.xlu0 0
  %63 = vperm.xlu0 %62, %v21
  %v64 = vpop.permute.xlu0 %63
  %67 = vset.pattern.permute.xlu0 0
  %68 = vperm.xlu0 %67, %v22
  %v69 = vpop.permute.xlu0 %68
  %72 = vset.pattern.permute.xlu0 0
  %73 = vperm.xlu0 %72, %v23
  %v74 = vpop.permute.xlu0 %73
  %77 = vset.pattern.permute.xlu0 0
  %78 = vperm.xlu0 %77, %v24
  %v79 = vpop.permute.xlu0 %78
  %82 = vset.pattern.permute.xlu0 0
  %83 = vperm.xlu0 %82, %v25
  %v84 = vpop.permute.xlu0 %83
  %87 = vset.pattern.permute.xlu0 0
  %88 = vperm.xlu0 %87, %v26
  %v89 = vpop.permute.xlu0 %88
  %92 = vset.pattern.permute.xlu0 0
  %93 = vperm.xlu0 %92, %v27
  %v94 = vpop.permute.xlu0 %93
  %97 = vset.pattern.permute.xlu0 0
  %98 = vperm.xlu0 %97, %v28
  %v99 = vpop.permute.xlu0 %98
  %102 = vset.pattern.permute.xlu0 0
  %103 = vperm.xlu0 %102, %v29
  %v104 = vpop.permute.xlu0 %103
  %107 = vset.pattern.permute.xlu0 0
  %108 = vperm.xlu0 %107, %v30
  %v109 = vpop.permute.xlu0 %108
  %v111 = vperm.slane %v14, 0
  %v112 = vmul.f32 %v34, %v111
  %v113 = vmul.f32 %v39, %v111
  %v114 = vmul.f32 %v44, %v111
  %v115 = vmul.f32 %v49, %v111
  %v116 = vmul.f32 %v54, %v111
  %v117 = vmul.f32 %v59, %v111
  %v118 = vmul.f32 %v64, %v111
  %v119 = vmul.f32 %v69, %v111
  %v120 = vmul.f32 %v74, %v111
  %v121 = vmul.f32 %v79, %v111
  %v122 = vmul.f32 %v84, %v111
  %v123 = vmul.f32 %v89, %v111
  %v124 = vmul.f32 %v94, %v111
  %v125 = vmul.f32 %v99, %v111
  %v126 = vmul.f32 %v104, %v111
  %v127 = vmul.f32 %v109, %v111
  %128 = vset.pattern.permute.xlu0 4
  %129 = vperm.xlu0 %128, %v15
  %v130 = vpop.permute.xlu0 %129
  %132 = vset.pattern.permute.xlu0 4
  %133 = vperm.xlu0 %132, %v16
  %v134 = vpop.permute.xlu0 %133
  %136 = vset.pattern.permute.xlu0 4
  %137 = vperm.xlu0 %136, %v17
  %v138 = vpop.permute.xlu0 %137
  %140 = vset.pattern.permute.xlu0 4
  %141 = vperm.xlu0 %140, %v18
  %v142 = vpop.permute.xlu0 %141
  %144 = vset.pattern.permute.xlu0 4
  %145 = vperm.xlu0 %144, %v19
  %v146 = vpop.permute.xlu0 %145
  %148 = vset.pattern.permute.xlu0 4
  %149 = vperm.xlu0 %148, %v20
  %v150 = vpop.permute.xlu0 %149
  %152 = vset.pattern.permute.xlu0 4
  %153 = vperm.xlu0 %152, %v21
  %v154 = vpop.permute.xlu0 %153
  %156 = vset.pattern.permute.xlu0 4
  %157 = vperm.xlu0 %156, %v22
  %v158 = vpop.permute.xlu0 %157
  %160 = vset.pattern.permute.xlu0 4
  %161 = vperm.xlu0 %160, %v23
  %v162 = vpop.permute.xlu0 %161
  %164 = vset.pattern.permute.xlu0 4
  %165 = vperm.xlu0 %164, %v24
  %v166 = vpop.permute.xlu0 %165
  %168 = vset.pattern.permute.xlu0 4
  %169 = vperm.xlu0 %168, %v25
  %v170 = vpop.permute.xlu0 %169
  %172 = vset.pattern.permute.xlu0 4
  %173 = vperm.xlu0 %172, %v26
  %v174 = vpop.permute.xlu0 %173
  %176 = vset.pattern.permute.xlu0 4
  %177 = vperm.xlu0 %176, %v27
  %v178 = vpop.permute.xlu0 %177
  %180 = vset.pattern.permute.xlu0 4
  %181 = vperm.xlu0 %180, %v28
  %v182 = vpop.permute.xlu0 %181
  %184 = vset.pattern.permute.xlu0 4
  %185 = vperm.xlu0 %184, %v29
  %v186 = vpop.permute.xlu0 %185
  %188 = vset.pattern.permute.xlu0 4
  %189 = vperm.xlu0 %188, %v30
  %v190 = vpop.permute.xlu0 %189
  %v192 = vadd.f32 %v130, %v112
  %v193 = vadd.f32 %v134, %v113
  %v194 = vadd.f32 %v138, %v114
  %v195 = vadd.f32 %v142, %v115
  %v196 = vadd.f32 %v146, %v116
  %v197 = vadd.f32 %v150, %v117
  %v198 = vadd.f32 %v154, %v118
  %v199 = vadd.f32 %v158, %v119
  %v200 = vadd.f32 %v162, %v120
  %v201 = vadd.f32 %v166, %v121
  %v202 = vadd.f32 %v170, %v122
  %v203 = vadd.f32 %v174, %v123
  %v204 = vadd.f32 %v178, %v124
  %v205 = vadd.f32 %v182, %v125
  %v206 = vadd.f32 %v186, %v126
  %v207 = vadd.f32 %v190, %v127
  %208 = vset.pattern.permute.xlu0 1
  %209 = vperm.xlu0 %208, %v15
  %v210 = vpop.permute.xlu0 %209
  %212 = vset.pattern.permute.xlu0 1
  %213 = vperm.xlu0 %212, %v16
  %v214 = vpop.permute.xlu0 %213
  %216 = vset.pattern.permute.xlu0 1
  %217 = vperm.xlu0 %216, %v17
  %v218 = vpop.permute.xlu0 %217
  %220 = vset.pattern.permute.xlu0 1
  %221 = vperm.xlu0 %220, %v18
  %v222 = vpop.permute.xlu0 %221
  %224 = vset.pattern.permute.xlu0 1
  %225 = vperm.xlu0 %224, %v19
  %v226 = vpop.permute.xlu0 %225
  %228 = vset.pattern.permute.xlu0 1
  %229 = vperm.xlu0 %228, %v20
  %v230 = vpop.permute.xlu0 %229
  %232 = vset.pattern.permute.xlu0 1
  %233 = vperm.xlu0 %232, %v21
  %v234 = vpop.permute.xlu0 %233
  %236 = vset.pattern.permute.xlu0 1
  %237 = vperm.xlu0 %236, %v22
  %v238 = vpop.permute.xlu0 %237
  %240 = vset.pattern.permute.xlu0 1
  %241 = vperm.xlu0 %240, %v23
  %v242 = vpop.permute.xlu0 %241
  %244 = vset.pattern.permute.xlu0 1
  %245 = vperm.xlu0 %244, %v24
  %v246 = vpop.permute.xlu0 %245
  %248 = vset.pattern.permute.xlu0 1
  %249 = vperm.xlu0 %248, %v25
  %v250 = vpop.permute.xlu0 %249
  %252 = vset.pattern.permute.xlu0 1
  %253 = vperm.xlu0 %252, %v26
  %v254 = vpop.permute.xlu0 %253
  %256 = vset.pattern.permute.xlu0 1
  %257 = vperm.xlu0 %256, %v27
  %v258 = vpop.permute.xlu0 %257
  %260 = vset.pattern.permute.xlu0 1
  %261 = vperm.xlu0 %260, %v28
  %v262 = vpop.permute.xlu0 %261
  %264 = vset.pattern.permute.xlu0 1
  %265 = vperm.xlu0 %264, %v29
  %v266 = vpop.permute.xlu0 %265
  %268 = vset.pattern.permute.xlu0 1
  %269 = vperm.xlu0 %268, %v30
  %v270 = vpop.permute.xlu0 %269
  %v272 = vperm.slane %v14, 1
  %v273 = vmul.f32 %v210, %v272
  %v274 = vmul.f32 %v214, %v272
  %v275 = vmul.f32 %v218, %v272
  %v276 = vmul.f32 %v222, %v272
  %v277 = vmul.f32 %v226, %v272
  %v278 = vmul.f32 %v230, %v272
  %v279 = vmul.f32 %v234, %v272
  %v280 = vmul.f32 %v238, %v272
  %v281 = vmul.f32 %v242, %v272
  %v282 = vmul.f32 %v246, %v272
  %v283 = vmul.f32 %v250, %v272
  %v284 = vmul.f32 %v254, %v272
  %v285 = vmul.f32 %v258, %v272
  %v286 = vmul.f32 %v262, %v272
  %v287 = vmul.f32 %v266, %v272
  %v288 = vmul.f32 %v270, %v272
  %v289 = vadd.f32 %v192, %v273
  %v290 = vadd.f32 %v193, %v274
  %v291 = vadd.f32 %v194, %v275
  %v292 = vadd.f32 %v195, %v276
  %v293 = vadd.f32 %v196, %v277
  %v294 = vadd.f32 %v197, %v278
  %v295 = vadd.f32 %v198, %v279
  %v296 = vadd.f32 %v199, %v280
  %v297 = vadd.f32 %v200, %v281
  %v298 = vadd.f32 %v201, %v282
  %v299 = vadd.f32 %v202, %v283
  %v300 = vadd.f32 %v203, %v284
  %v301 = vadd.f32 %v204, %v285
  %v302 = vadd.f32 %v205, %v286
  %v303 = vadd.f32 %v206, %v287
  %v304 = vadd.f32 %v207, %v288
  %305 = vset.pattern.permute.xlu0 2
  %306 = vperm.xlu0 %305, %v15
  %v307 = vpop.permute.xlu0 %306
  %309 = vset.pattern.permute.xlu0 2
  %310 = vperm.xlu0 %309, %v16
  %v311 = vpop.permute.xlu0 %310
  %313 = vset.pattern.permute.xlu0 2
  %314 = vperm.xlu0 %313, %v17
  %v315 = vpop.permute.xlu0 %314
  %317 = vset.pattern.permute.xlu0 2
  %318 = vperm.xlu0 %317, %v18
  %v319 = vpop.permute.xlu0 %318
  %321 = vset.pattern.permute.xlu0 2
  %322 = vperm.xlu0 %321, %v19
  %v323 = vpop.permute.xlu0 %322
  %325 = vset.pattern.permute.xlu0 2
  %326 = vperm.xlu0 %325, %v20
  %v327 = vpop.permute.xlu0 %326
  %329 = vset.pattern.permute.xlu0 2
  %330 = vperm.xlu0 %329, %v21
  %v331 = vpop.permute.xlu0 %330
  %333 = vset.pattern.permute.xlu0 2
  %334 = vperm.xlu0 %333, %v22
  %v335 = vpop.permute.xlu0 %334
  %337 = vset.pattern.permute.xlu0 2
  %338 = vperm.xlu0 %337, %v23
  %v339 = vpop.permute.xlu0 %338
  %341 = vset.pattern.permute.xlu0 2
  %342 = vperm.xlu0 %341, %v24
  %v343 = vpop.permute.xlu0 %342
  %345 = vset.pattern.permute.xlu0 2
  %346 = vperm.xlu0 %345, %v25
  %v347 = vpop.permute.xlu0 %346
  %349 = vset.pattern.permute.xlu0 2
  %350 = vperm.xlu0 %349, %v26
  %v351 = vpop.permute.xlu0 %350
  %353 = vset.pattern.permute.xlu0 2
  %354 = vperm.xlu0 %353, %v27
  %v355 = vpop.permute.xlu0 %354
  %357 = vset.pattern.permute.xlu0 2
  %358 = vperm.xlu0 %357, %v28
  %v359 = vpop.permute.xlu0 %358
  %361 = vset.pattern.permute.xlu0 2
  %362 = vperm.xlu0 %361, %v29
  %v363 = vpop.permute.xlu0 %362
  %365 = vset.pattern.permute.xlu0 2
  %366 = vperm.xlu0 %365, %v30
  %v367 = vpop.permute.xlu0 %366
  %v369 = vperm.slane %v14, 2
  %v370 = vmul.f32 %v307, %v369
  %v371 = vmul.f32 %v311, %v369
  %v372 = vmul.f32 %v315, %v369
  %v373 = vmul.f32 %v319, %v369
  %v374 = vmul.f32 %v323, %v369
  %v375 = vmul.f32 %v327, %v369
  %v376 = vmul.f32 %v331, %v369
  %v377 = vmul.f32 %v335, %v369
  %v378 = vmul.f32 %v339, %v369
  %v379 = vmul.f32 %v343, %v369
  %v380 = vmul.f32 %v347, %v369
  %v381 = vmul.f32 %v351, %v369
  %v382 = vmul.f32 %v355, %v369
  %v383 = vmul.f32 %v359, %v369
  %v384 = vmul.f32 %v363, %v369
  %v385 = vmul.f32 %v367, %v369
  %v386 = vadd.f32 %v289, %v370
  %v387 = vadd.f32 %v290, %v371
  %v388 = vadd.f32 %v291, %v372
  %v389 = vadd.f32 %v292, %v373
  %v390 = vadd.f32 %v293, %v374
  %v391 = vadd.f32 %v294, %v375
  %v392 = vadd.f32 %v295, %v376
  %v393 = vadd.f32 %v296, %v377
  %v394 = vadd.f32 %v297, %v378
  %v395 = vadd.f32 %v298, %v379
  %v396 = vadd.f32 %v299, %v380
  %v397 = vadd.f32 %v300, %v381
  %v398 = vadd.f32 %v301, %v382
  %v399 = vadd.f32 %v302, %v383
  %v400 = vadd.f32 %v303, %v384
  %v401 = vadd.f32 %v304, %v385
  %402 = vset.pattern.permute.xlu0 3
  %403 = vperm.xlu0 %402, %v15
  %v404 = vpop.permute.xlu0 %403
  %406 = vset.pattern.permute.xlu0 3
  %407 = vperm.xlu0 %406, %v16
  %v408 = vpop.permute.xlu0 %407
  %410 = vset.pattern.permute.xlu0 3
  %411 = vperm.xlu0 %410, %v17
  %v412 = vpop.permute.xlu0 %411
  %414 = vset.pattern.permute.xlu0 3
  %415 = vperm.xlu0 %414, %v18
  %v416 = vpop.permute.xlu0 %415
  %418 = vset.pattern.permute.xlu0 3
  %419 = vperm.xlu0 %418, %v19
  %v420 = vpop.permute.xlu0 %419
  %422 = vset.pattern.permute.xlu0 3
  %423 = vperm.xlu0 %422, %v20
  %v424 = vpop.permute.xlu0 %423
  %426 = vset.pattern.permute.xlu0 3
  %427 = vperm.xlu0 %426, %v21
  %v428 = vpop.permute.xlu0 %427
  %430 = vset.pattern.permute.xlu0 3
  %431 = vperm.xlu0 %430, %v22
  %v432 = vpop.permute.xlu0 %431
  %434 = vset.pattern.permute.xlu0 3
  %435 = vperm.xlu0 %434, %v23
  %v436 = vpop.permute.xlu0 %435
  %438 = vset.pattern.permute.xlu0 3
  %439 = vperm.xlu0 %438, %v24
  %v440 = vpop.permute.xlu0 %439
  %442 = vset.pattern.permute.xlu0 3
  %443 = vperm.xlu0 %442, %v25
  %v444 = vpop.permute.xlu0 %443
  %446 = vset.pattern.permute.xlu0 3
  %447 = vperm.xlu0 %446, %v26
  %v448 = vpop.permute.xlu0 %447
  %450 = vset.pattern.permute.xlu0 3
  %451 = vperm.xlu0 %450, %v27
  %v452 = vpop.permute.xlu0 %451
  %454 = vset.pattern.permute.xlu0 3
  %455 = vperm.xlu0 %454, %v28
  %v456 = vpop.permute.xlu0 %455
  %458 = vset.pattern.permute.xlu0 3
  %459 = vperm.xlu0 %458, %v29
  %v460 = vpop.permute.xlu0 %459
  %462 = vset.pattern.permute.xlu0 3
  %463 = vperm.xlu0 %462, %v30
  %v464 = vpop.permute.xlu0 %463
  %v466 = vperm.slane %v14, 3
  %v467 = vmul.f32 %v404, %v466
  %v468 = vmul.f32 %v408, %v466
  %v469 = vmul.f32 %v412, %v466
  %v470 = vmul.f32 %v416, %v466
  %v471 = vmul.f32 %v420, %v466
  %v472 = vmul.f32 %v424, %v466
  %v473 = vmul.f32 %v428, %v466
  %v474 = vmul.f32 %v432, %v466
  %v475 = vmul.f32 %v436, %v466
  %v476 = vmul.f32 %v440, %v466
  %v477 = vmul.f32 %v444, %v466
  %v478 = vmul.f32 %v448, %v466
  %v479 = vmul.f32 %v452, %v466
  %v480 = vmul.f32 %v456, %v466
  %v481 = vmul.f32 %v460, %v466
  %v482 = vmul.f32 %v464, %v466
  %v483 = vadd.f32 %v386, %v467
  %v484 = vadd.f32 %v387, %v468
  %v485 = vadd.f32 %v388, %v469
  %v486 = vadd.f32 %v389, %v470
  %v487 = vadd.f32 %v390, %v471
  %v488 = vadd.f32 %v391, %v472
  %v489 = vadd.f32 %v392, %v473
  %v490 = vadd.f32 %v393, %v474
  %v491 = vadd.f32 %v394, %v475
  %v492 = vadd.f32 %v395, %v476
  %v493 = vadd.f32 %v396, %v477
  %v494 = vadd.f32 %v397, %v478
  %v495 = vadd.f32 %v398, %v479
  %v496 = vadd.f32 %v399, %v480
  %v497 = vadd.f32 %v400, %v481
  %v498 = vadd.f32 %v401, %v482
  %v499 = vmax.f32 %v483, 0.0
  %v500 = vmax.f32 %v484, 0.0
  %v501 = vmax.f32 %v485, 0.0
  %v502 = vmax.f32 %v486, 0.0
  %v503 = vmax.f32 %v487, 0.0
  %v504 = vmax.f32 %v488, 0.0
  %v505 = vmax.f32 %v489, 0.0
  %v506 = vmax.f32 %v490, 0.0
  %v507 = vmax.f32 %v491, 0.0
  %v508 = vmax.f32 %v492, 0.0
  %v509 = vmax.f32 %v493, 0.0
  %v510 = vmax.f32 %v494, 0.0
  %v511 = vmax.f32 %v495, 0.0
  %v512 = vmax.f32 %v496, 0.0
  %v513 = vmax.f32 %v497, 0.0
  %v514 = vmax.f32 %v498, 0.0
  %v515 = vld [vmem:[%s2] sm:$0xff]
  %516 = vset.pattern.permute.xlu0 5
  %517 = vperm.xlu0 %516, %v15
  %v518 = vpop.permute.xlu0 %517
  %520 = vmatpush.msra.mxu0 %v514
  %521 = vmatpush.msra.mxu0 %v513
  %522 = vmatpush.msra.mxu0 %v512
  %523 = vmatpush.msra.mxu0 %v511
  %524 = vmatpush.msra.mxu0 %v510
  %525 = vmatpush.msra.mxu0 %v509
  %526 = vmatpush.msra.mxu0 %v508
  %527 = vmatpush.msra.mxu0 %v507
  %528 = vmatpush.msra.mxu0 %v506
  %529 = vmatpush.msra.mxu0 %v505
  %530 = vmatpush.msra.mxu0 %v504
  %531 = vmatpush.msra.mxu0 %v503
  %532 = vmatpush.msra.mxu0 %v502
  %533 = vmatpush.msra.mxu0 %v501
  %534 = vmatpush.msra.mxu0 %v500
  %535 = vmatpush.msra.mxu0 %v499
  %536 = vmatmul.f32.gmra.mxu0 %v515
  %v537 = vpop.f32.mrf.mxu0
  %v538 = vadd.f32 %v518, %v537
  %539 = vdwg.mxu0
  %v541 = vrot.slane %v538, 1
  %v543 = vsub.f32 %v538, %v541
  %v544 = vand.u32 2147483647, %v543
  %v545 = vsub.f32 0.0, %v544
  %v546 = vmul.f32 %v545, 1.442695
  %v547 = vpow.pop %v546
  %v548 = vadd.f32 %v547, 1.0
  %v549 = vrcp.pop %v548
  %v550 = vmul.f32 %v548, %v549
  %v551 = vsub.f32 1.0, %v550
  %v552 = vmul.f32 %v549, %v551
  %v553 = vadd.f32 %v549, %v552
  %vm554 = vweird.f32 %v548
  %vm555 = vweird.f32 %v549
  %vm556 = vmor %vm554, %vm555
  %v557 = vsel %vm556, %v549, %v553
  %v558 = vand.u32 2147483647, %v548
  %vm559 = vcmp.eq.f32.partialorder %v558, 8.507059e+37
  %v560 = vand.u32 %v548, 2147483648
  %v561 = vor.u32 1.1754944e-38, %v560
  %v562 = vsel %vm559, %v561, %v557
  %v563 = vmul.f32 1.0, %v562
  %vm564 = vcmp.ge.f32.partialorder %v543, 0.0
  %v565 = vmul.f32 %v547, %v563
  %v566 = vsel %vm564, %v563, %v565
  %v567 = vsub.f32 1.0, %v566
  %v568 = vlaneseq
  %v569 = vshrl.u32 %v568, 7
  %vm570 = vcmp.eq.s32.totalorder %v569, 0
  %vm571 = vcmp.eq.s32.totalorder %v569, 1
  %v572 = vperm.slane %v567, 0
  %v573 = vsel %vm571, %v572, %v538
  %v574 = vperm.slane %v566, 0
  %v575 = vsel %vm570, %v574, %v573
  %vm576 = vcmask 64512
  %577 = vst.msk [vmem:[%s3] sm:$0xff] %vm576, %v575
  // Predicated region
  $region14: #{policy_forward.1} parent=0 // pred_check
    _
  $region15: #{policy_forward.1} parent=0 // pred_check_branch
    %579 = sbr.rel (0) target = $region17
  $region16: #{policy_forward.1} parent=0 // pred_region
    _
  $region17: #{policy_forward.1} parent=0 // pred_fallthru
    _
  // Predicated region
  $region18: #{policy_forward.1} parent=0 // pred_check
    _
  $region19: #{policy_forward.1} parent=0 // pred_check_branch
    %581 = sbr.rel (0) target = $region21
  $region20: #{policy_forward.1} parent=0 // pred_region
    _
  $region21: #{policy_forward.1} parent=0 // pred_fallthru
    _

</llo_original>
